<compile_context>
chip_gen: v5e
topology: v5e:2x2
jax: 0.10.0
libtpu: 0.0.40
codegen_flags: <defaults>
</compile_context>

<pallas_src>
import jax
import jax.numpy as jnp
from jax.experimental import pallas as pl
from jax.experimental.pallas import tpu as pltpu


def attention_kernel(ctx_ref, w_ref, b_ref, uw_ref, out_ref):
    # ctx_ref: (TB, S*F)   lane-dense context tile (F = 2H); f32 or bf16
    # w_ref:   (S*F, S*H)  block-diagonal replication of the (F, H) linear weight
    # b_ref:   (1, S*H)    linear bias tiled S times
    # uw_ref:  (S*H, S)    block-diagonal replication of the (H, 1) context vector
    # out_ref: (TB, F)
    s = uw_ref.shape[1]
    f = out_ref.shape[1]

    ctx = ctx_ref[...].astype(jnp.float32)           # (TB, S*F), lane-dense

    # u = tanh(ctx @ W_bd + b): one MXU matmul with native K=512 / N=256 shape.
    u = jnp.tanh(
        jnp.dot(ctx, w_ref[...], preferred_element_type=jnp.float32) + b_ref[...]
    )                                                # (TB, S*H)

    # scores[:, s] = u[:, s*H:(s+1)*H] @ uw, via the block-diagonal uw.
    scores = jnp.dot(u, uw_ref[...], preferred_element_type=jnp.float32)  # (TB, S)

    # softmax over the sequence axis (torch Softmax(dim=1)), numerically stable.
    m = jnp.max(scores, axis=-1, keepdims=True)      # (TB, 1)
    e = jnp.exp(scores - m)                          # (TB, S)
    denom = jnp.sum(e, axis=-1, keepdims=True)       # (TB, 1)
    weight = e * pl.reciprocal(denom, approx=False)  # (TB, S)

    # out[b, :] = sum_s weight[b, s] * context[b, s, :]
    # 8 static 64-lane slices multiply-accumulated on the VPU.
    acc = weight[:, 0:1] * ctx[:, 0:f]
    for si in range(1, s):
        acc = acc + weight[:, si:si + 1] * ctx[:, si * f:(si + 1) * f]
    out_ref[...] = acc.astype(out_ref.dtype)


def _round_up(x, m):
    return ((x + m - 1) // m) * m


def _pick_batch_tile(B, tb_max, align):
    """Pick the batch tile: big (amortize per-step overhead), >=2 tiles when the
    batch is large enough (both v7x TCs), and aligned so the block's
    second-to-last dim is a multiple of `align` or equal to the full dim."""
    tb = min(tb_max, B)
    if B >= 2 * align and pl.cdiv(B, tb) < 2:
        tb = pl.cdiv(B, 2)
    if B >= align:
        tb = min(_round_up(tb, align), B)
    else:
        tb = B          # block dim equals the full array dim
    return tb


def han_attention(context, w, b, uw, *, tb=1024, context_in_bf16=False):
    """context: (B, S, 2H) f32; w: (2H, H) (pre-transposed); b: (H,); uw: (H,)
    -> (B, 2H) f32.  context_in_bf16 halves the HBM stream (opt-in, relaxes
    the 1e-5 f32 parity)."""
    B, S, F = context.shape
    H = w.shape[1]
    assert w.shape[0] == F

    # Lane-dense streaming layout: (B, S*F) is a free, contiguous reshape.
    ctx2d = context.reshape(B, S * F)
    if context_in_bf16:
        ctx2d = ctx2d.astype(jnp.bfloat16)

    # Block-diagonal weights so the whole tile goes through the MXU as one
    # matmul; these are tiny (<= 512 KiB) and stay VMEM-resident across the grid.
    eye_s = jnp.eye(S, dtype=jnp.float32)
    w_bd = jnp.kron(eye_s, w.astype(jnp.float32))              # (S*F, S*H)
    uw_bd = jnp.kron(eye_s, uw.reshape(H, 1).astype(jnp.float32))  # (S*H, S)
    b_t = jnp.tile(b.astype(jnp.float32), S).reshape(1, S * H)  # (1, S*H)

    align = 16 if context_in_bf16 else 8   # sublane packing (bf16 packs 2 rows)
    tb = _pick_batch_tile(B, tb, align)
    n_tiles = pl.cdiv(B, tb)
    # No batch padding / output slicing: Pallas masks the ragged last tile
    # (OOB input rows see unspecified data but each output row is independent,
    # and OOB output writes are discarded).

    out = pl.pallas_call(
        attention_kernel,
        out_shape=jax.ShapeDtypeStruct((B, F), jnp.float32),
        grid_spec=pl.GridSpec(
            grid=(n_tiles,),
            in_specs=[
                pl.BlockSpec((tb, S * F), lambda i: (i, 0)),      # context tile (streamed)
                pl.BlockSpec((S * F, S * H), lambda i: (0, 0)),   # W_bd   (VMEM-resident)
                pl.BlockSpec((1, S * H), lambda i: (0, 0)),       # bias   (VMEM-resident)
                pl.BlockSpec((S * H, S), lambda i: (0, 0)),       # uw_bd  (VMEM-resident)
            ],
            out_specs=pl.BlockSpec((tb, F), lambda i: (i, 0)),
        ),
        compiler_params=pltpu.CompilerParams(
            dimension_semantics=("parallel",),
            # VMEM use at tb=1024 is < 8 MiB, well under every generation's
            # default scoped limit (16 MiB v5e / 32 MiB v6e, v7x); no
            # vmem_limit_bytes override needed.  If tb is pushed past ~2048,
            # set vmem_limit_bytes explicitly (v7x has only 64 MiB physical).
        ),
    )(ctx2d, w_bd, b_t, uw_bd)
    return out


def han_attention_ref(context, w, b, uw):
    """Pure-JAX reference mirroring the PyTorch forward."""
    u = jnp.tanh(jnp.einsum("bsf,fh->bsh", context, w) + b)      # (B, S, H)
    scores = jnp.einsum("bsh,h->bs", u, uw)                      # (B, S)
    weight = jax.nn.softmax(scores, axis=1)                      # softmax over seq
    return jnp.einsum("bs,bsf->bf", weight, context)             # (B, 2H)


if __name__ == "__main__":
    # config.hidden_dim = 32  ->  linear: 64 -> 32, uw: (32, 1)
    batch, seq, hidden = 2, 8, 32

    key = jax.random.PRNGKey(0)
    k_ctx, k_w, k_b, k_uw = jax.random.split(key, 4)

    context = jax.random.normal(k_ctx, (batch, seq, 2 * hidden), dtype=jnp.float32)
    # Linear(2H -> H): torch weight is (H, 2H); store pre-transposed (2H, H).
    w = jax.random.normal(k_w, (2 * hidden, hidden), dtype=jnp.float32) * 0.1
    b = jax.random.normal(k_b, (hidden,), dtype=jnp.float32) * 0.1
    uw = jax.random.normal(k_uw, (hidden,), dtype=jnp.float32)  # torch.randn(H, 1)

    # Small demo case (single tile, tb == B).
    out = jax.block_until_ready(han_attention(context, w, b, uw))
    ref = jax.block_until_ready(han_attention_ref(context, w, b, uw))
    assert out.shape == (batch, 2 * hidden)
    assert jnp.allclose(out, ref, atol=1e-5, rtol=1e-5)

    # Larger ragged batch: exercises the multi-tile grid (>=2 tiles for the
    # v7x parallel axis) and the masked edge tile with NO pad/slice copies
    # (B=300 -> tb=152, grid=2).
    big_b = 300
    k2 = jax.random.PRNGKey(1)
    ctx_big = jax.random.normal(k2, (big_b, seq, 2 * hidden), dtype=jnp.float32)
    out_big = jax.block_until_ready(han_attention(ctx_big, w, b, uw))
    ref_big = jax.block_until_ready(han_attention_ref(ctx_big, w, b, uw))
    assert out_big.shape == (big_b, 2 * hidden)
    assert jnp.allclose(out_big, ref_big, atol=1e-5, rtol=1e-5)

    # Opt-in bf16 context stream (v5e/v6e bandwidth option).  Compare against
    # the f32 reference evaluated on bf16-rounded context so the check is
    # apples-to-apples (the kernel casts the tile back to f32 before any math).
    out_bf16 = jax.block_until_ready(
        han_attention(ctx_big, w, b, uw, context_in_bf16=True)
    )
    ctx_big_rounded = ctx_big.astype(jnp.bfloat16).astype(jnp.float32)
    ref_bf16 = jax.block_until_ready(han_attention_ref(ctx_big_rounded, w, b, uw))
    assert jnp.allclose(out_bf16, ref_bf16, atol=1e-4, rtol=1e-4)

    print("KERNEL_OK")
</pallas_src>

<mosaic_0001>
module attributes {stable_mosaic.version = 11 : i64} {
  func.func @attention_kernel(%arg0: i32, %arg1: memref<2x512xf32, #tpu.memory_space<vmem>>, %arg2: memref<512x256xf32, #tpu.memory_space<vmem>>, %arg3: memref<1x256xf32, #tpu.memory_space<vmem>>, %arg4: memref<256x8xf32, #tpu.memory_space<vmem>>, %arg5: memref<2x64xf32, #tpu.memory_space<vmem>>) attributes {dimension_semantics = [#tpu.dimension_semantics<parallel>], iteration_bounds = array<i64: 1>, scalar_prefetch = 0 : i64, scratch_operands = 0 : i64, tpu.core_type = #tpu.core_type<tc>, window_params = [{transform_indices = @transform_0, window_bounds = array<i64: 2, 512>}, {pipeline_mode = #tpu.pipeline_mode<synchronous>, transform_indices = @transform_1, window_bounds = array<i64: 512, 256>}, {pipeline_mode = #tpu.pipeline_mode<synchronous>, transform_indices = @transform_2, window_bounds = array<i64: 1, 256>}, {pipeline_mode = #tpu.pipeline_mode<synchronous>, transform_indices = @transform_3, window_bounds = array<i64: 256, 8>}, {transform_indices = @transform_4, window_bounds = array<i64: 2, 64>}]} {
    %c0 = arith.constant 0 : index
    %c0_0 = arith.constant 0 : index
    %0 = vector.load %arg1[%c0, %c0_0] : memref<2x512xf32, #tpu.memory_space<vmem>>, vector<2x512xf32>
    %c0_1 = arith.constant 0 : index
    %c0_2 = arith.constant 0 : index
    %1 = vector.load %arg2[%c0_1, %c0_2] : memref<512x256xf32, #tpu.memory_space<vmem>>, vector<512x256xf32>
    %cst = arith.constant dense<0.000000e+00> : vector<2x256xf32>
    %2 = tpu.matmul %0, %1, %cst {dimension_numbers = #tpu.dot_dimension_numbers<[1], [0], [0], [1], [0, 0, 1, 1], [], []>} : vector<2x512xf32>, vector<512x256xf32>, vector<2x256xf32> -> vector<2x256xf32>
    %c0_3 = arith.constant 0 : index
    %c0_4 = arith.constant 0 : index
    %3 = vector.load %arg3[%c0_3, %c0_4] : memref<1x256xf32, #tpu.memory_space<vmem>>, vector<1x256xf32>
    %4 = vector.broadcast %3 : vector<1x256xf32> to vector<2x256xf32>
    %5 = arith.addf %2, %4 : vector<2x256xf32>
    %6 = math.tanh %5 : vector<2x256xf32>
    %c0_5 = arith.constant 0 : index
    %c0_6 = arith.constant 0 : index
    %7 = vector.load %arg4[%c0_5, %c0_6] : memref<256x8xf32, #tpu.memory_space<vmem>>, vector<256x8xf32>
    %cst_7 = arith.constant dense<0.000000e+00> : vector<2x8xf32>
    %8 = tpu.matmul %6, %7, %cst_7 {dimension_numbers = #tpu.dot_dimension_numbers<[1], [0], [0], [1], [0, 0, 1, 1], [], []>} : vector<2x256xf32>, vector<256x8xf32>, vector<2x8xf32> -> vector<2x8xf32>
    %cst_8 = arith.constant dense<0xFF800000> : vector<2xf32>
    %9 = vector.multi_reduction <maximumf>, %8, %cst_8 [1] : vector<2x8xf32> to vector<2xf32>
    %10 = vector.shape_cast %9 : vector<2xf32> to vector<2x1xf32>
    %11 = vector.broadcast %10 : vector<2x1xf32> to vector<2x8xf32>
    %12 = arith.subf %8, %11 : vector<2x8xf32>
    %13 = math.exp %12 : vector<2x8xf32>
    %cst_9 = arith.constant dense<0.000000e+00> : vector<2xf32>
    %14 = vector.multi_reduction <add>, %13, %cst_9 [1] : vector<2x8xf32> to vector<2xf32>
    %15 = vector.shape_cast %14 : vector<2xf32> to vector<2x1xf32>
    %16 = tpu.reciprocal %15 : vector<2x1xf32> -> vector<2x1xf32>
    %17 = vector.broadcast %16 : vector<2x1xf32> to vector<2x8xf32>
    %18 = arith.mulf %13, %17 : vector<2x8xf32>
    %19 = vector.extract_strided_slice %18 {offsets = [0, 0], sizes = [2, 1], strides = [1, 1]} : vector<2x8xf32> to vector<2x1xf32>
    %20 = vector.extract_strided_slice %0 {offsets = [0, 0], sizes = [2, 64], strides = [1, 1]} : vector<2x512xf32> to vector<2x64xf32>
    %21 = vector.broadcast %19 : vector<2x1xf32> to vector<2x64xf32>
    %22 = arith.mulf %21, %20 : vector<2x64xf32>
    %23 = vector.extract_strided_slice %18 {offsets = [0, 1], sizes = [2, 1], strides = [1, 1]} : vector<2x8xf32> to vector<2x1xf32>
    %24 = vector.extract_strided_slice %0 {offsets = [0, 64], sizes = [2, 64], strides = [1, 1]} : vector<2x512xf32> to vector<2x64xf32>
    %25 = vector.broadcast %23 : vector<2x1xf32> to vector<2x64xf32>
    %26 = arith.mulf %25, %24 : vector<2x64xf32>
    %27 = arith.addf %22, %26 : vector<2x64xf32>
    %28 = vector.extract_strided_slice %18 {offsets = [0, 2], sizes = [2, 1], strides = [1, 1]} : vector<2x8xf32> to vector<2x1xf32>
    %29 = vector.extract_strided_slice %0 {offsets = [0, 128], sizes = [2, 64], strides = [1, 1]} : vector<2x512xf32> to vector<2x64xf32>
    %30 = vector.broadcast %28 : vector<2x1xf32> to vector<2x64xf32>
    %31 = arith.mulf %30, %29 : vector<2x64xf32>
    %32 = arith.addf %27, %31 : vector<2x64xf32>
    %33 = vector.extract_strided_slice %18 {offsets = [0, 3], sizes = [2, 1], strides = [1, 1]} : vector<2x8xf32> to vector<2x1xf32>
    %34 = vector.extract_strided_slice %0 {offsets = [0, 192], sizes = [2, 64], strides = [1, 1]} : vector<2x512xf32> to vector<2x64xf32>
    %35 = vector.broadcast %33 : vector<2x1xf32> to vector<2x64xf32>
    %36 = arith.mulf %35, %34 : vector<2x64xf32>
    %37 = arith.addf %32, %36 : vector<2x64xf32>
    %38 = vector.extract_strided_slice %18 {offsets = [0, 4], sizes = [2, 1], strides = [1, 1]} : vector<2x8xf32> to vector<2x1xf32>
    %39 = vector.extract_strided_slice %0 {offsets = [0, 256], sizes = [2, 64], strides = [1, 1]} : vector<2x512xf32> to vector<2x64xf32>
    %40 = vector.broadcast %38 : vector<2x1xf32> to vector<2x64xf32>
    %41 = arith.mulf %40, %39 : vector<2x64xf32>
    %42 = arith.addf %37, %41 : vector<2x64xf32>
    %43 = vector.extract_strided_slice %18 {offsets = [0, 5], sizes = [2, 1], strides = [1, 1]} : vector<2x8xf32> to vector<2x1xf32>
    %44 = vector.extract_strided_slice %0 {offsets = [0, 320], sizes = [2, 64], strides = [1, 1]} : vector<2x512xf32> to vector<2x64xf32>
    %45 = vector.broadcast %43 : vector<2x1xf32> to vector<2x64xf32>
    %46 = arith.mulf %45, %44 : vector<2x64xf32>
    %47 = arith.addf %42, %46 : vector<2x64xf32>
    %48 = vector.extract_strided_slice %18 {offsets = [0, 6], sizes = [2, 1], strides = [1, 1]} : vector<2x8xf32> to vector<2x1xf32>
    %49 = vector.extract_strided_slice %0 {offsets = [0, 384], sizes = [2, 64], strides = [1, 1]} : vector<2x512xf32> to vector<2x64xf32>
    %50 = vector.broadcast %48 : vector<2x1xf32> to vector<2x64xf32>
    %51 = arith.mulf %50, %49 : vector<2x64xf32>
    %52 = arith.addf %47, %51 : vector<2x64xf32>
    %53 = vector.extract_strided_slice %18 {offsets = [0, 7], sizes = [2, 1], strides = [1, 1]} : vector<2x8xf32> to vector<2x1xf32>
    %54 = vector.extract_strided_slice %0 {offsets = [0, 448], sizes = [2, 64], strides = [1, 1]} : vector<2x512xf32> to vector<2x64xf32>
    %55 = vector.broadcast %53 : vector<2x1xf32> to vector<2x64xf32>
    %56 = arith.mulf %55, %54 : vector<2x64xf32>
    %57 = arith.addf %52, %56 : vector<2x64xf32>
    %c0_10 = arith.constant 0 : index
    %c0_11 = arith.constant 0 : index
    %58 = vector.load %arg5[%c0_10, %c0_11] : memref<2x64xf32, #tpu.memory_space<vmem>>, vector<2x64xf32>
    tpu.vector_store %arg5[%c0_10, %c0_11], %57 {strides = array<i32>} : memref<2x64xf32, #tpu.memory_space<vmem>>, vector<2x64xf32>,
    return
  }
  func.func @transform_0(%arg0: i32) -> (i32, i32) {
    %c0_i32 = arith.constant 0 : i32
    %c0_i32_0 = arith.constant 0 : i32
    return %arg0, %c0_i32 : i32, i32
  }
  func.func @transform_1(%arg0: i32) -> (i32, i32) {
    %c0_i32 = arith.constant 0 : i32
    %c0_i32_0 = arith.constant 0 : i32
    %c0_i32_1 = arith.constant 0 : i32
    return %c0_i32, %c0_i32_0 : i32, i32
  }
  func.func @transform_2(%arg0: i32) -> (i32, i32) {
    %c0_i32 = arith.constant 0 : i32
    %c0_i32_0 = arith.constant 0 : i32
    %c0_i32_1 = arith.constant 0 : i32
    return %c0_i32, %c0_i32_0 : i32, i32
  }
  func.func @transform_3(%arg0: i32) -> (i32, i32) {
    %c0_i32 = arith.constant 0 : i32
    %c0_i32_0 = arith.constant 0 : i32
    %c0_i32_1 = arith.constant 0 : i32
    return %c0_i32, %c0_i32_0 : i32, i32
  }
  func.func @transform_4(%arg0: i32) -> (i32, i32) {
    %c0_i32 = arith.constant 0 : i32
    %c0_i32_0 = arith.constant 0 : i32
    return %arg0, %c0_i32 : i32, i32
  }
}

</mosaic_0001>

<llo_original>
// kernel: tpu_custom_call.1
$region0: #{tpu_custom_call.1}
  #allocation0 [shape = 'u32[]', space=smem, size = 0x4, offset = 0x4, fixed_abs, tag = 'smem constant byte address 0x4 - core index']
  #allocation1 [shape = 'u32[72,128]{1,0:T(1,128)}', space=vmem, size = 0x9000, scoped, tag = 'internal scratch']
  %s0 = inlined_call_operand.vmem [shape: f32[2,512], index: 0, kind: input, shape index: {}]
  %s1 = inlined_call_operand.hbm [shape: f32[512,256], index: 1, kind: input, shape index: {}]
  %s2 = inlined_call_operand.vmem [shape: f32[1,256], index: 2, kind: input, shape index: {}]
  %s3 = inlined_call_operand.vmem [shape: f32[256,8], index: 3, kind: input, shape index: {}]
  %s4 = inlined_call_operand.hbm [shape: f32[2,64], index: 4, kind: output, shape index: {}]
  %s5 = sld [smem:[#allocation0]]
  $region30: #{tpu_custom_call.1} parent=0
    _
  %s7 = ssub.s32 1, %s5
  %s8 = scalar_select 0, %s7, %s5
  $region1: #{tpu_custom_call.1} parent=0
    #allocation2 [shape = 'u8[524288]{0}', space=vmem, size = 0x80000, scoped, tag = 'input window, operand 1, single buffered']
    #allocation3 [shape = 's32[1]{0}', space=sflag, size = 0x4, scoped, tag = 'scoped memory for tpu_custom_call.1']
    #allocation4 [shape = 's32[1]{0}', space=sflag, size = 0x4, scoped, tag = 'scoped memory for tpu_custom_call.1']
    #allocation5 [shape = 'u8[1024]{0}', space=vmem, size = 0x400, scoped, tag = 'output window, operand 0, single buffered']
    %9 = vsyncpa [#allocation3], 0
    %10 = vsyncpa [#allocation4], 0
    // Predicated region
    $region2: #{tpu_custom_call.1} parent=1 // pred_check
      _
    $region3: #{tpu_custom_call.1} parent=1 // pred_check_branch
      %12 = sbr.rel (0) target = $region5
    $region4: #{tpu_custom_call.1} parent=1 // pred_region
      _
    $region5: #{tpu_custom_call.1} parent=1 // pred_fallthru
      _
    // Predicated region
    $region6: #{tpu_custom_call.1} parent=1 // pred_check
      _
    $region7: #{tpu_custom_call.1} parent=1 // pred_check_branch
      %14 = sbr.rel (0) target = $region9
    $region8: #{tpu_custom_call.1} parent=1 // pred_region
      %16 = vsyncadd [#allocation3], 0
      %s17 = sshll.u32 %s1, 4
      %s18 = int_to_ptr.hbm [resolvable:$true] %s17
      %s19 = sshll.u32 [#allocation2], 4
      %s20 = int_to_ptr.vmem [resolvable:$true] %s19
      %25 = dma.hbm_to_vmem [thread:$0]  %s18, 16384, %s20, [#allocation3], 256, 256, 16
    $region9: #{tpu_custom_call.1} parent=1 // pred_fallthru
      _
    // Predicated region
    $region10: #{tpu_custom_call.1} parent=1 // pred_check
      _
    $region11: #{tpu_custom_call.1} parent=1 // pred_check_branch
      %27 = sbr.rel (0) target = $region13
    $region12: #{tpu_custom_call.1} parent=1 // pred_region
      _
    $region13: #{tpu_custom_call.1} parent=1 // pred_fallthru
      _
    // Predicated region
    $region14: #{tpu_custom_call.1} parent=1 // pred_check
      _
    $region15: #{tpu_custom_call.1} parent=1 // pred_check_branch
      %29 = sbr.rel (0) target = $region17
    $region16: #{tpu_custom_call.1} parent=1 // pred_region
      _
    $region17: #{tpu_custom_call.1} parent=1 // pred_fallthru
      _
    // Predicated region
    $region18: #{tpu_custom_call.1} parent=1 // pred_check
      _
    $region19: #{tpu_custom_call.1} parent=1 // pred_check_branch
      %31 = sbr.rel (0) target = $region21
    $region20: #{tpu_custom_call.1} parent=1 // pred_region
      %33 = dma.done [#allocation3], 16384
    $region21: #{tpu_custom_call.1} parent=1 // pred_fallthru
      _
    %v34 = vld [vmem:[%s0] sm:$0xff]
    %v35 = vld [vmem:[#allocation2] sm:$0xff]
    %v36 = vld [vmem:[#allocation2 + $0x8] sm:$0xff]
    %v37 = vld [vmem:[#allocation2 + $0x10] sm:$0xff]
    %v38 = vld [vmem:[#allocation2 + $0x18] sm:$0xff]
    %v39 = vld [vmem:[#allocation2 + $0x20] sm:$0xff]
    %v40 = vld [vmem:[#allocation2 + $0x28] sm:$0xff]
    %v41 = vld [vmem:[#allocation2 + $0x30] sm:$0xff]
    %v42 = vld [vmem:[#allocation2 + $0x38] sm:$0xff]
    %v43 = vld [vmem:[#allocation2 + $0x40] sm:$0xff]
    %v44 = vld [vmem:[#allocation2 + $0x48] sm:$0xff]
    %v45 = vld [vmem:[#allocation2 + $0x50] sm:$0xff]
    %v46 = vld [vmem:[#allocation2 + $0x58] sm:$0xff]
    %v47 = vld [vmem:[#allocation2 + $0x60] sm:$0xff]
    %v48 = vld [vmem:[#allocation2 + $0x68] sm:$0xff]
    %v49 = vld [vmem:[#allocation2 + $0x70] sm:$0xff]
    %v50 = vld [vmem:[#allocation2 + $0x78] sm:$0xff]
    %v51 = vld [vmem:[#allocation2 + $0x80] sm:$0xff]
    %v52 = vld [vmem:[#allocation2 + $0x88] sm:$0xff]
    %v53 = vld [vmem:[#allocation2 + $0x90] sm:$0xff]
    %v54 = vld [vmem:[#allocation2 + $0x98] sm:$0xff]
    %v55 = vld [vmem:[#allocation2 + $0xa0] sm:$0xff]
    %v56 = vld [vmem:[#allocation2 + $0xa8] sm:$0xff]
    %v57 = vld [vmem:[#allocation2 + $0xb0] sm:$0xff]
    %v58 = vld [vmem:[#allocation2 + $0xb8] sm:$0xff]
    %v59 = vld [vmem:[#allocation2 + $0xc0] sm:$0xff]
    %v60 = vld [vmem:[#allocation2 + $0xc8] sm:$0xff]
    %v61 = vld [vmem:[#allocation2 + $0xd0] sm:$0xff]
    %v62 = vld [vmem:[#allocation2 + $0xd8] sm:$0xff]
    %v63 = vld [vmem:[#allocation2 + $0xe0] sm:$0xff]
    %v64 = vld [vmem:[#allocation2 + $0xe8] sm:$0xff]
    %v65 = vld [vmem:[#allocation2 + $0xf0] sm:$0xff]
    %v66 = vld [vmem:[#allocation2 + $0xf8] sm:$0xff]
    %v67 = vld [vmem:[#allocation2 + $0x100] sm:$0xff]
    %v68 = vld [vmem:[#allocation2 + $0x108] sm:$0xff]
    %v69 = vld [vmem:[#allocation2 + $0x110] sm:$0xff]
    %v70 = vld [vmem:[#allocation2 + $0x118] sm:$0xff]
    %v71 = vld [vmem:[#allocation2 + $0x120] sm:$0xff]
    %v72 = vld [vmem:[#allocation2 + $0x128] sm:$0xff]
    %v73 = vld [vmem:[#allocation2 + $0x130] sm:$0xff]
    %v74 = vld [vmem:[#allocation2 + $0x138] sm:$0xff]
    %v75 = vld [vmem:[#allocation2 + $0x140] sm:$0xff]
    %v76 = vld [vmem:[#allocation2 + $0x148] sm:$0xff]
    %v77 = vld [vmem:[#allocation2 + $0x150] sm:$0xff]
    %v78 = vld [vmem:[#allocation2 + $0x158] sm:$0xff]
    %v79 = vld [vmem:[#allocation2 + $0x160] sm:$0xff]
    %v80 = vld [vmem:[#allocation2 + $0x168] sm:$0xff]
    %v81 = vld [vmem:[#allocation2 + $0x170] sm:$0xff]
    %v82 = vld [vmem:[#allocation2 + $0x178] sm:$0xff]
    %v83 = vld [vmem:[#allocation2 + $0x180] sm:$0xff]
    %v84 = vld [vmem:[#allocation2 + $0x188] sm:$0xff]
    %v85 = vld [vmem:[#allocation2 + $0x190] sm:$0xff]
    %v86 = vld [vmem:[#allocation2 + $0x198] sm:$0xff]
    %v87 = vld [vmem:[#allocation2 + $0x1a0] sm:$0xff]
    %v88 = vld [vmem:[#allocation2 + $0x1a8] sm:$0xff]
    %v89 = vld [vmem:[#allocation2 + $0x1b0] sm:$0xff]
    %v90 = vld [vmem:[#allocation2 + $0x1b8] sm:$0xff]
    %v91 = vld [vmem:[#allocation2 + $0x1c0] sm:$0xff]
    %v92 = vld [vmem:[#allocation2 + $0x1c8] sm:$0xff]
    %v93 = vld [vmem:[#allocation2 + $0x1d0] sm:$0xff]
    %v94 = vld [vmem:[#allocation2 + $0x1d8] sm:$0xff]
    %v95 = vld [vmem:[#allocation2 + $0x1e0] sm:$0xff]
    %v96 = vld [vmem:[#allocation2 + $0x1e8] sm:$0xff]
    %v97 = vld [vmem:[#allocation2 + $0x1f0] sm:$0xff]
    %v98 = vld [vmem:[#allocation2 + $0x1f8] sm:$0xff]
    %v99 = vld [vmem:[#allocation2 + $0x200] sm:$0xff]
    %v100 = vld [vmem:[#allocation2 + $0x208] sm:$0xff]
    %v101 = vld [vmem:[#allocation2 + $0x210] sm:$0xff]
    %v102 = vld [vmem:[#allocation2 + $0x218] sm:$0xff]
    %v103 = vld [vmem:[#allocation2 + $0x220] sm:$0xff]
    %v104 = vld [vmem:[#allocation2 + $0x228] sm:$0xff]
    %v105 = vld [vmem:[#allocation2 + $0x230] sm:$0xff]
    %v106 = vld [vmem:[#allocation2 + $0x238] sm:$0xff]
    %v107 = vld [vmem:[#allocation2 + $0x240] sm:$0xff]
    %v108 = vld [vmem:[#allocation2 + $0x248] sm:$0xff]
    %v109 = vld [vmem:[#allocation2 + $0x250] sm:$0xff]
    %v110 = vld [vmem:[#allocation2 + $0x258] sm:$0xff]
    %v111 = vld [vmem:[#allocation2 + $0x260] sm:$0xff]
    %v112 = vld [vmem:[#allocation2 + $0x268] sm:$0xff]
    %v113 = vld [vmem:[#allocation2 + $0x270] sm:$0xff]
    %v114 = vld [vmem:[#allocation2 + $0x278] sm:$0xff]
    %v115 = vld [vmem:[#allocation2 + $0x280] sm:$0xff]
    %v116 = vld [vmem:[#allocation2 + $0x288] sm:$0xff]
    %v117 = vld [vmem:[#allocation2 + $0x290] sm:$0xff]
    %v118 = vld [vmem:[#allocation2 + $0x298] sm:$0xff]
    %v119 = vld [vmem:[#allocation2 + $0x2a0] sm:$0xff]
    %v120 = vld [vmem:[#allocation2 + $0x2a8] sm:$0xff]
    %v121 = vld [vmem:[#allocation2 + $0x2b0] sm:$0xff]
    %v122 = vld [vmem:[#allocation2 + $0x2b8] sm:$0xff]
    %v123 = vld [vmem:[#allocation2 + $0x2c0] sm:$0xff]
    %v124 = vld [vmem:[#allocation2 + $0x2c8] sm:$0xff]
    %v125 = vld [vmem:[#allocation2 + $0x2d0] sm:$0xff]
    %v126 = vld [vmem:[#allocation2 + $0x2d8] sm:$0xff]
    %v127 = vld [vmem:[#allocation2 + $0x2e0] sm:$0xff]
    %v128 = vld [vmem:[#allocation2 + $0x2e8] sm:$0xff]
    %v129 = vld [vmem:[#allocation2 + $0x2f0] sm:$0xff]
    %v130 = vld [vmem:[#allocation2 + $0x2f8] sm:$0xff]
    %v131 = vld [vmem:[#allocation2 + $0x300] sm:$0xff]
    %v132 = vld [vmem:[#allocation2 + $0x308] sm:$0xff]
    %v133 = vld [vmem:[#allocation2 + $0x310] sm:$0xff]
    %v134 = vld [vmem:[#allocation2 + $0x318] sm:$0xff]
    %v135 = vld [vmem:[#allocation2 + $0x320] sm:$0xff]
    %v136 = vld [vmem:[#allocation2 + $0x328] sm:$0xff]
    %v137 = vld [vmem:[#allocation2 + $0x330] sm:$0xff]
    %v138 = vld [vmem:[#allocation2 + $0x338] sm:$0xff]
    %v139 = vld [vmem:[#allocation2 + $0x340] sm:$0xff]
    %v140 = vld [vmem:[#allocation2 + $0x348] sm:$0xff]
    %v141 = vld [vmem:[#allocation2 + $0x350] sm:$0xff]
    %v142 = vld [vmem:[#allocation2 + $0x358] sm:$0xff]
    %v143 = vld [vmem:[#allocation2 + $0x360] sm:$0xff]
    %v144 = vld [vmem:[#allocation2 + $0x368] sm:$0xff]
    %v145 = vld [vmem:[#allocation2 + $0x370] sm:$0xff]
    %v146 = vld [vmem:[#allocation2 + $0x378] sm:$0xff]
    %v147 = vld [vmem:[#allocation2 + $0x380] sm:$0xff]
    %v148 = vld [vmem:[#allocation2 + $0x388] sm:$0xff]
    %v149 = vld [vmem:[#allocation2 + $0x390] sm:$0xff]
    %v150 = vld [vmem:[#allocation2 + $0x398] sm:$0xff]
    %v151 = vld [vmem:[#allocation2 + $0x3a0] sm:$0xff]
    %v152 = vld [vmem:[#allocation2 + $0x3a8] sm:$0xff]
    %v153 = vld [vmem:[#allocation2 + $0x3b0] sm:$0xff]
    %v154 = vld [vmem:[#allocation2 + $0x3b8] sm:$0xff]
    %v155 = vld [vmem:[#allocation2 + $0x3c0] sm:$0xff]
    %v156 = vld [vmem:[#allocation2 + $0x3c8] sm:$0xff]
    %v157 = vld [vmem:[#allocation2 + $0x3d0] sm:$0xff]
    %v158 = vld [vmem:[#allocation2 + $0x3d8] sm:$0xff]
    %v159 = vld [vmem:[#allocation2 + $0x3e0] sm:$0xff]
    %v160 = vld [vmem:[#allocation2 + $0x3e8] sm:$0xff]
    %v161 = vld [vmem:[#allocation2 + $0x3f0] sm:$0xff]
    %v162 = vld [vmem:[#allocation2 + $0x3f8] sm:$0xff]
    %v163 = vld [vmem:[%s2] sm:$0x3]
    %v165 = vperm.slane %v163, 0
    %v166 = vperm.slane %v163, 1
    %170 = vst [vmem:[#allocation1] ss:$4 sm:$0xff] %v34
    %v171 = vld.sshfl [vmem:[#allocation1] sm:$0xff pattern:$0x73625140]
    %v172 = vld.sshfl [vmem:[#allocation1 + $0x8] sm:$0xff pattern:$0x73625140]
    %v173 = vld.sshfl [vmem:[#allocation1 + $0x10] sm:$0xff pattern:$0x73625140]
    %v174 = vld.sshfl [vmem:[#allocation1 + $0x18] sm:$0xff pattern:$0x73625140]
    %179 = vmatpush.msra.mxu0 %v65
    %180 = vmatpush.msra.mxu0 %v63
    %181 = vmatpush.msra.mxu0 %v61
    %182 = vmatpush.msra.mxu0 %v59
    %183 = vmatpush.msra.mxu0 %v57
    %184 = vmatpush.msra.mxu0 %v55
    %185 = vmatpush.msra.mxu0 %v53
    %186 = vmatpush.msra.mxu0 %v51
    %187 = vmatpush.msra.mxu0 %v49
    %188 = vmatpush.msra.mxu0 %v47
    %189 = vmatpush.msra.mxu0 %v45
    %190 = vmatpush.msra.mxu0 %v43
    %191 = vmatpush.msra.mxu0 %v41
    %192 = vmatpush.msra.mxu0 %v39
    %193 = vmatpush.msra.mxu0 %v37
    %194 = vmatpush.msra.mxu0 %v35
    %195 = vmatmul.f32.gmra.mxu0 %v171
    %v196 = vpop.f32.mrf.mxu0
    %v197 = vadd.f32 %v165, %v196
    %198 = vdwg.mxu0
    %199 = vmatpush.msra.mxu0 %v97
    %200 = vmatpush.msra.mxu0 %v95
    %201 = vmatpush.msra.mxu0 %v93
    %202 = vmatpush.msra.mxu0 %v91
    %203 = vmatpush.msra.mxu0 %v89
    %204 = vmatpush.msra.mxu0 %v87
    %205 = vmatpush.msra.mxu0 %v85
    %206 = vmatpush.msra.mxu0 %v83
    %207 = vmatpush.msra.mxu0 %v81
    %208 = vmatpush.msra.mxu0 %v79
    %209 = vmatpush.msra.mxu0 %v77
    %210 = vmatpush.msra.mxu0 %v75
    %211 = vmatpush.msra.mxu0 %v73
    %212 = vmatpush.msra.mxu0 %v71
    %213 = vmatpush.msra.mxu0 %v69
    %214 = vmatpush.msra.mxu0 %v67
    %215 = vmatmul.f32.gmra.mxu0 %v172
    %v216 = vpop.f32.mrf.mxu0
    %v217 = vadd.f32 %v197, %v216
    %218 = vdwg.mxu0
    %219 = vmatpush.msra.mxu0 %v129
    %220 = vmatpush.msra.mxu0 %v127
    %221 = vmatpush.msra.mxu0 %v125
    %222 = vmatpush.msra.mxu0 %v123
    %223 = vmatpush.msra.mxu0 %v121
    %224 = vmatpush.msra.mxu0 %v119
    %225 = vmatpush.msra.mxu0 %v117
    %226 = vmatpush.msra.mxu0 %v115
    %227 = vmatpush.msra.mxu0 %v113
    %228 = vmatpush.msra.mxu0 %v111
    %229 = vmatpush.msra.mxu0 %v109
    %230 = vmatpush.msra.mxu0 %v107
    %231 = vmatpush.msra.mxu0 %v105
    %232 = vmatpush.msra.mxu0 %v103
    %233 = vmatpush.msra.mxu0 %v101
    %234 = vmatpush.msra.mxu0 %v99
    %235 = vmatmul.f32.gmra.mxu0 %v173
    %v236 = vpop.f32.mrf.mxu0
    %v237 = vadd.f32 %v217, %v236
    %238 = vdwg.mxu0
    %239 = vmatpush.msra.mxu0 %v161
    %240 = vmatpush.msra.mxu0 %v159
    %241 = vmatpush.msra.mxu0 %v157
    %242 = vmatpush.msra.mxu0 %v155
    %243 = vmatpush.msra.mxu0 %v153
    %244 = vmatpush.msra.mxu0 %v151
    %245 = vmatpush.msra.mxu0 %v149
    %246 = vmatpush.msra.mxu0 %v147
    %247 = vmatpush.msra.mxu0 %v145
    %248 = vmatpush.msra.mxu0 %v143
    %249 = vmatpush.msra.mxu0 %v141
    %250 = vmatpush.msra.mxu0 %v139
    %251 = vmatpush.msra.mxu0 %v137
    %252 = vmatpush.msra.mxu0 %v135
    %253 = vmatpush.msra.mxu0 %v133
    %254 = vmatpush.msra.mxu0 %v131
    %255 = vmatmul.f32.gmra.mxu0 %v174
    %v256 = vpop.f32.mrf.mxu0
    %v257 = vadd.f32 %v237, %v256
    %258 = vdwg.mxu0
    %259 = vmatpush.msra.mxu0 %v66
    %260 = vmatpush.msra.mxu0 %v64
    %261 = vmatpush.msra.mxu0 %v62
    %262 = vmatpush.msra.mxu0 %v60
    %263 = vmatpush.msra.mxu0 %v58
    %264 = vmatpush.msra.mxu0 %v56
    %265 = vmatpush.msra.mxu0 %v54
    %266 = vmatpush.msra.mxu0 %v52
    %267 = vmatpush.msra.mxu0 %v50
    %268 = vmatpush.msra.mxu0 %v48
    %269 = vmatpush.msra.mxu0 %v46
    %270 = vmatpush.msra.mxu0 %v44
    %271 = vmatpush.msra.mxu0 %v42
    %272 = vmatpush.msra.mxu0 %v40
    %273 = vmatpush.msra.mxu0 %v38
    %274 = vmatpush.msra.mxu0 %v36
    %275 = vmatmul.f32.gmra.mxu0 %v171
    %v276 = vpop.f32.mrf.mxu0
    %v277 = vadd.f32 %v166, %v276
    %278 = vdwg.mxu0
    %279 = vmatpush.msra.mxu0 %v98
    %280 = vmatpush.msra.mxu0 %v96
    %281 = vmatpush.msra.mxu0 %v94
    %282 = vmatpush.msra.mxu0 %v92
    %283 = vmatpush.msra.mxu0 %v90
    %284 = vmatpush.msra.mxu0 %v88
    %285 = vmatpush.msra.mxu0 %v86
    %286 = vmatpush.msra.mxu0 %v84
    %287 = vmatpush.msra.mxu0 %v82
    %288 = vmatpush.msra.mxu0 %v80
    %289 = vmatpush.msra.mxu0 %v78
    %290 = vmatpush.msra.mxu0 %v76
    %291 = vmatpush.msra.mxu0 %v74
    %292 = vmatpush.msra.mxu0 %v72
    %293 = vmatpush.msra.mxu0 %v70
    %294 = vmatpush.msra.mxu0 %v68
    %295 = vmatmul.f32.gmra.mxu0 %v172
    %v296 = vpop.f32.mrf.mxu0
    %v297 = vadd.f32 %v277, %v296
    %298 = vdwg.mxu0
    %299 = vmatpush.msra.mxu0 %v130
    %300 = vmatpush.msra.mxu0 %v128
    %301 = vmatpush.msra.mxu0 %v126
    %302 = vmatpush.msra.mxu0 %v124
    %303 = vmatpush.msra.mxu0 %v122
    %304 = vmatpush.msra.mxu0 %v120
    %305 = vmatpush.msra.mxu0 %v118
    %306 = vmatpush.msra.mxu0 %v116
    %307 = vmatpush.msra.mxu0 %v114
    %308 = vmatpush.msra.mxu0 %v112
    %309 = vmatpush.msra.mxu0 %v110
    %310 = vmatpush.msra.mxu0 %v108
    %311 = vmatpush.msra.mxu0 %v106
    %312 = vmatpush.msra.mxu0 %v104
    %313 = vmatpush.msra.mxu0 %v102
    %314 = vmatpush.msra.mxu0 %v100
    %315 = vmatmul.f32.gmra.mxu0 %v173
    %v316 = vpop.f32.mrf.mxu0
    %v317 = vadd.f32 %v297, %v316
    %318 = vdwg.mxu0
    %319 = vmatpush.msra.mxu0 %v162
    %320 = vmatpush.msra.mxu0 %v160
    %321 = vmatpush.msra.mxu0 %v158
    %322 = vmatpush.msra.mxu0 %v156
    %323 = vmatpush.msra.mxu0 %v154
    %324 = vmatpush.msra.mxu0 %v152
    %325 = vmatpush.msra.mxu0 %v150
    %326 = vmatpush.msra.mxu0 %v148
    %327 = vmatpush.msra.mxu0 %v146
    %328 = vmatpush.msra.mxu0 %v144
    %329 = vmatpush.msra.mxu0 %v142
    %330 = vmatpush.msra.mxu0 %v140
    %331 = vmatpush.msra.mxu0 %v138
    %332 = vmatpush.msra.mxu0 %v136
    %333 = vmatpush.msra.mxu0 %v134
    %334 = vmatpush.msra.mxu0 %v132
    %335 = vmatmul.f32.gmra.mxu0 %v174
    %v336 = vpop.f32.mrf.mxu0
    %v337 = vadd.f32 %v317, %v336
    %338 = vdwg.mxu0
    %v339 = vtanh.pop %v257
    %v340 = vtanh.pop %v337
    %v341 = vld [vmem:[%s3] sm:$0xff]
    %v342 = vld [vmem:[%s3 + $0x8] sm:$0xff]
    %v343 = vld [vmem:[%s3 + $0x10] sm:$0xff]
    %v344 = vld [vmem:[%s3 + $0x18] sm:$0xff]
    %v345 = vld [vmem:[%s3 + $0x20] sm:$0xff]
    %v346 = vld [vmem:[%s3 + $0x28] sm:$0xff]
    %v347 = vld [vmem:[%s3 + $0x30] sm:$0xff]
    %v348 = vld [vmem:[%s3 + $0x38] sm:$0xff]
    %v349 = vld [vmem:[%s3 + $0x40] sm:$0xff]
    %v350 = vld [vmem:[%s3 + $0x48] sm:$0xff]
    %v351 = vld [vmem:[%s3 + $0x50] sm:$0xff]
    %v352 = vld [vmem:[%s3 + $0x58] sm:$0xff]
    %v353 = vld [vmem:[%s3 + $0x60] sm:$0xff]
    %v354 = vld [vmem:[%s3 + $0x68] sm:$0xff]
    %v355 = vld [vmem:[%s3 + $0x70] sm:$0xff]
    %v356 = vld [vmem:[%s3 + $0x78] sm:$0xff]
    %v357 = vld [vmem:[%s3 + $0x80] sm:$0xff]
    %v358 = vld [vmem:[%s3 + $0x88] sm:$0xff]
    %v359 = vld [vmem:[%s3 + $0x90] sm:$0xff]
    %v360 = vld [vmem:[%s3 + $0x98] sm:$0xff]
    %v361 = vld [vmem:[%s3 + $0xa0] sm:$0xff]
    %v362 = vld [vmem:[%s3 + $0xa8] sm:$0xff]
    %v363 = vld [vmem:[%s3 + $0xb0] sm:$0xff]
    %v364 = vld [vmem:[%s3 + $0xb8] sm:$0xff]
    %v365 = vld [vmem:[%s3 + $0xc0] sm:$0xff]
    %v366 = vld [vmem:[%s3 + $0xc8] sm:$0xff]
    %v367 = vld [vmem:[%s3 + $0xd0] sm:$0xff]
    %v368 = vld [vmem:[%s3 + $0xd8] sm:$0xff]
    %v369 = vld [vmem:[%s3 + $0xe0] sm:$0xff]
    %v370 = vld [vmem:[%s3 + $0xe8] sm:$0xff]
    %v371 = vld [vmem:[%s3 + $0xf0] sm:$0xff]
    %v372 = vld [vmem:[%s3 + $0xf8] sm:$0xff]
    %373 = vmatpush.msra.mxu0 %v356
    %374 = vmatpush.msra.mxu0 %v355
    %375 = vmatpush.msra.mxu0 %v354
    %376 = vmatpush.msra.mxu0 %v353
    %377 = vmatpush.msra.mxu0 %v352
    %378 = vmatpush.msra.mxu0 %v351
    %379 = vmatpush.msra.mxu0 %v350
    %380 = vmatpush.msra.mxu0 %v349
    %381 = vmatpush.msra.mxu0 %v348
    %382 = vmatpush.msra.mxu0 %v347
    %383 = vmatpush.msra.mxu0 %v346
    %384 = vmatpush.msra.mxu0 %v345
    %385 = vmatpush.msra.mxu0 %v344
    %386 = vmatpush.msra.mxu0 %v343
    %387 = vmatpush.msra.mxu0 %v342
    %388 = vmatpush.msra.mxu0 %v341
    %389 = vmatmul.f32.gmra.mxu0 %v339
    %v390 = vpop.f32.mrf.mxu0
    %v391 = vadd.f32 0.0, %v390
    %392 = vdwg.mxu0
    %393 = vmatpush.msra.mxu0 %v372
    %394 = vmatpush.msra.mxu0 %v371
    %395 = vmatpush.msra.mxu0 %v370
    %396 = vmatpush.msra.mxu0 %v369
    %397 = vmatpush.msra.mxu0 %v368
    %398 = vmatpush.msra.mxu0 %v367
    %399 = vmatpush.msra.mxu0 %v366
    %400 = vmatpush.msra.mxu0 %v365
    %401 = vmatpush.msra.mxu0 %v364
    %402 = vmatpush.msra.mxu0 %v363
    %403 = vmatpush.msra.mxu0 %v362
    %404 = vmatpush.msra.mxu0 %v361
    %405 = vmatpush.msra.mxu0 %v360
    %406 = vmatpush.msra.mxu0 %v359
    %407 = vmatpush.msra.mxu0 %v358
    %408 = vmatpush.msra.mxu0 %v357
    %409 = vmatmul.f32.gmra.mxu0 %v340
    %v410 = vpop.f32.mrf.mxu0
    %v411 = vadd.f32 %v391, %v410
    %412 = vdwg.mxu0
    %vm413 = vcmask 58368
    %v414 = vsel %vm413, %v411, -inf
    %415 = vmax.xlane.f32.xlu0 %v414
    %v416 = vpop.xlane.xlu0 %415
    %v417 = vsub.f32 %v411, %v416
    %v418 = vmul.f32 %v417, 1.442695
    %v419 = vpow.pop %v418
    %v420 = vsel %vm413, %v419, 0.0
    %421 = vadd.xlane.f32.xlu0 %v420
    %v422 = vpop.xlane.xlu0 %421
    %v423 = vrcp.pop %v422
    %v424 = vmul.f32 %v422, %v423
    %v425 = vsub.f32 1.0, %v424
    %v426 = vmul.f32 %v423, %v425
    %v427 = vadd.f32 %v423, %v426
    %vm428 = vweird.f32 %v422
    %vm429 = vweird.f32 %v423
    %vm430 = vmor %vm428, %vm429
    %v431 = vsel %vm430, %v423, %v427
    %v432 = vand.u32 2147483647, %v422
    %vm433 = vcmp.eq.f32.partialorder %v432, 8.507059e+37
    %v434 = vand.u32 %v422, 2147483648
    %v435 = vor.u32 1.1754944e-38, %v434
    %v436 = vsel %vm433, %v435, %v431
    %v437 = vmul.f32 %v419, %v436
    %439 = vset.pattern.permute.xlu0 0
    %440 = vperm.xlu0 %439, %v437
    %v441 = vpop.permute.xlu0 %440
    %v443 = vmul.f32 %v441, %v34
    %444 = vset.pattern.permute.xlu0 1
    %445 = vperm.xlu0 %444, %v437
    %v446 = vpop.permute.xlu0 %445
    %448 = vst [vmem:[#allocation1] ss:$4 sm:$0xff] %v34
    %v449 = vld.sshfl [vmem:[#allocation1] sm:$0xff pattern:$0x73625140]
    %450 = vrot.lane.b32.xlu0 %v449, 64
    %v451 = vpop.permute.xlu0 %450
    %v453 = vmul.f32 %v446, %v451
    %v454 = vadd.f32 %v443, %v453
    %455 = vset.pattern.permute.xlu0 2
    %456 = vperm.xlu0 %455, %v437
    %v457 = vpop.permute.xlu0 %456
    %459 = vst [vmem:[#allocation1] ss:$4 sm:$0xff] %v34
    %v460 = vld.sshfl [vmem:[#allocation1 + $0x8] sm:$0xff pattern:$0x73625140]
    %v462 = vmul.f32 %v457, %v460
    %v463 = vadd.f32 %v454, %v462
    %464 = vset.pattern.permute.xlu0 3
    %465 = vperm.xlu0 %464, %v437
    %v466 = vpop.permute.xlu0 %465
    %468 = vst [vmem:[#allocation1] ss:$4 sm:$0xff] %v34
    %v469 = vld.sshfl [vmem:[#allocation1 + $0x8] sm:$0xff pattern:$0x73625140]
    %470 = vrot.lane.b32.xlu0 %v469, 64
    %v471 = vpop.permute.xlu0 %470
    %v473 = vmul.f32 %v466, %v471
    %v474 = vadd.f32 %v463, %v473
    %475 = vset.pattern.permute.xlu0 4
    %476 = vperm.xlu0 %475, %v437
    %v477 = vpop.permute.xlu0 %476
    %479 = vst [vmem:[#allocation1] ss:$4 sm:$0xff] %v34
    %v480 = vld.sshfl [vmem:[#allocation1 + $0x10] sm:$0xff pattern:$0x73625140]
    %v482 = vmul.f32 %v477, %v480
    %v483 = vadd.f32 %v474, %v482
    %484 = vset.pattern.permute.xlu0 5
    %485 = vperm.xlu0 %484, %v437
    %v486 = vpop.permute.xlu0 %485
    %488 = vst [vmem:[#allocation1] ss:$4 sm:$0xff] %v34
    %v489 = vld.sshfl [vmem:[#allocation1 + $0x10] sm:$0xff pattern:$0x73625140]
    %490 = vrot.lane.b32.xlu0 %v489, 64
    %v491 = vpop.permute.xlu0 %490
    %v493 = vmul.f32 %v486, %v491
    %v494 = vadd.f32 %v483, %v493
    %495 = vset.pattern.permute.xlu0 6
    %496 = vperm.xlu0 %495, %v437
    %v497 = vpop.permute.xlu0 %496
    %499 = vst [vmem:[#allocation1] ss:$4 sm:$0xff] %v34
    %v500 = vld.sshfl [vmem:[#allocation1 + $0x18] sm:$0xff pattern:$0x73625140]
    %v502 = vmul.f32 %v497, %v500
    %v503 = vadd.f32 %v494, %v502
    %504 = vset.pattern.permute.xlu0 7
    %505 = vperm.xlu0 %504, %v437
    %v506 = vpop.permute.xlu0 %505
    %508 = vst [vmem:[#allocation1] ss:$4 sm:$0xff] %v34
    %v509 = vld.sshfl [vmem:[#allocation1 + $0x18] sm:$0xff pattern:$0x73625140]
    %510 = vrot.lane.b32.xlu0 %v509, 64
    %v511 = vpop.permute.xlu0 %510
    %v513 = vmul.f32 %v506, %v511
    %v514 = vadd.f32 %v503, %v513
    %vm515 = vcmask 517120
    %516 = vst.msk [vmem:[#allocation5] sm:$0x3] %vm515, %v514
    // Predicated region
    $region22: #{tpu_custom_call.1} parent=1 // pred_check
      _
    $region23: #{tpu_custom_call.1} parent=1 // pred_check_branch
      %518 = sbr.rel (0) target = $region25
    $region24: #{tpu_custom_call.1} parent=1 // pred_region
      %520 = vsyncadd [#allocation4], 0
      %s522 = sshll.u32 [#allocation5], 4
      %s523 = int_to_ptr.vmem [resolvable:$true] %s522
      %s524 = sshll.u32 %s4, 4
      %s525 = int_to_ptr.hbm [resolvable:$true] %s524
      %527 = dma.vmem_to_hbm [thread:$0]  %s523, 32, %s525, [#allocation4]
    $region25: #{tpu_custom_call.1} parent=1 // pred_fallthru
      _
    // Predicated region
    $region26: #{tpu_custom_call.1} parent=1 // pred_check
      _
    $region27: #{tpu_custom_call.1} parent=1 // pred_check_branch
      %529 = sbr.rel (0) target = $region29
    $region28: #{tpu_custom_call.1} parent=1 // pred_region
      %531 = dma.done [#allocation4], 32
    $region29: #{tpu_custom_call.1} parent=1 // pred_fallthru
      _
    %532 = vsyncpa [#allocation3], 1
    %533 = vsyncpa [#allocation4], 1

</llo_original>
